<compile_context>
chip_gen: v6e
topology: v6e:2x2x1
jax: 0.10.0
libtpu: 0.0.40
codegen_flags: <defaults>
</compile_context>

<pallas_src>
import functools

import jax
import jax.numpy as jnp
from jax import lax
from jax.experimental import pallas as pl
from jax.experimental.pallas import tpu as pltpu


def _round_up(x, n):
    return ((x + n - 1) // n) * n


# ----------------------------------------------------------------------------- kernels
def _csl_kernel(x_ref, inv_x_ref, inv_w_ref, w_ref, o_ref, *, matmul_dtype):
    """Single-K-block kernel: one MXU matmul + fused output scaling."""
    x = x_ref[...]
    w = w_ref[...]
    if matmul_dtype is not None:
        x = x.astype(matmul_dtype)
        w = w.astype(matmul_dtype)
    acc = jnp.dot(x, w, preferred_element_type=jnp.float32)
    o_ref[...] = (acc * inv_x_ref[...] * inv_w_ref[...]).astype(o_ref.dtype)


def _csl_kernel_ktiled(x_ref, inv_x_ref, inv_w_ref, w_ref, o_ref, acc_ref, *,
                       matmul_dtype):
    """K-tiled kernel: f32 VMEM accumulator, init/finalize via pl.when."""
    k = pl.program_id(2)

    @pl.when(k == 0)
    def _():
        acc_ref[...] = jnp.zeros_like(acc_ref)

    x = x_ref[...]
    w = w_ref[...]
    if matmul_dtype is not None:
        x = x.astype(matmul_dtype)
        w = w.astype(matmul_dtype)
    acc_ref[...] += jnp.dot(x, w, preferred_element_type=jnp.float32)

    @pl.when(k == pl.num_programs(2) - 1)
    def _():
        o_ref[...] = (acc_ref[...] * inv_x_ref[...] * inv_w_ref[...]).astype(o_ref.dtype)


# ----------------------------------------------------------------------------- wrapper
def cosine_sim_linear(x, weight, scale=1.0, *, eps=1e-12,
                      block_m=None, block_n=None, block_k=None,
                      matmul_dtype=None):
    """x: (..., dim_in), weight: (dim_in, dim_out) -> (..., dim_out)."""
    orig_shape = x.shape
    dim_in = orig_shape[-1]
    dim_out = weight.shape[1]
    x2d = x.reshape(-1, dim_in)
    m = x2d.shape[0]
    out_dtype = x.dtype
    out_itemsize = jnp.dtype(out_dtype).itemsize

    # ---- inverse norms precomputed ONCE (tiny f32 arrays, outside the grid) ----
    xf = x2d.astype(jnp.float32)
    inv_x = lax.rsqrt(jnp.maximum(jnp.sum(xf * xf, axis=-1, keepdims=True),
                                  eps * eps))                      # (m, 1) == 1/max(||x||,eps)
    wf = weight.astype(jnp.float32)
    w_norm = jnp.sqrt(jnp.sum(wf * wf, axis=0, keepdims=True))      # (1, dim_out)
    inv_w = (float(scale) / jnp.maximum(w_norm, eps)).astype(jnp.float32)  # scale folded in

    # ---- VMEM budget (generation aware, conservative fallback) ----------------
    try:
        info = pltpu.get_tpu_info()
        vmem_cap = int(getattr(info, "vmem_capacity_bytes", 64 * 1024 * 1024))
    except Exception:
        vmem_cap = 64 * 1024 * 1024          # v7x-safe fallback
    budget = int(0.4 * vmem_cap)             # cap on the double-buffered working set

    # ---- tile-size selection ---------------------------------------------------
    bm = block_m if block_m is not None else 256
    bn = block_n if block_n is not None else 512
    bm = _round_up(max(8, min(bm, _round_up(m, 8))), 8)
    bn = _round_up(max(128, min(bn, _round_up(dim_out, 128))), 128)
    bk = dim_in if block_k is None else max(128, min(block_k, dim_in))

    x_itemsize = jnp.dtype(x2d.dtype).itemsize
    w_itemsize = jnp.dtype(weight.dtype).itemsize

    def _working_set(bm_, bn_, bk_):
        # double-buffered x / w / out tiles + inv vectors + f32 accumulator margin
        return (2 * bm_ * bk_ * x_itemsize
                + 2 * bk_ * bn_ * w_itemsize
                + 2 * bm_ * bn_ * out_itemsize
                + 2 * (bm_ + bn_) * 4
                + bm_ * bn_ * 4)

    # Shrink N, then tile K, then shrink M until the working set fits the budget.
    while _working_set(bm, bn, bk) > budget:
        if bn > 128:
            bn = _round_up(max(128, bn // 2), 128)
        elif bk > 512:
            bk = _round_up(max(512, bk // 2), 128)
        elif bm > 8:
            bm = _round_up(max(8, bm // 2), 8)
        else:
            break

    if bk >= dim_in:
        bk, k_pad = dim_in, dim_in            # K untiled (full extent, no 128 constraint)
    else:
        bk = _round_up(bk, 128)
        k_pad = _round_up(dim_in, bk)

    m_pad = _round_up(m, bm)
    n_pad = _round_up(dim_out, bn)
    num_m, num_n, num_k = m_pad // bm, n_pad // bn, k_pad // bk

    # v7x: guarantee >=2 parallel grid steps so both TensorCores get work.
    if num_m * num_n < 2 and m > 8:
        bm = _round_up(-(-m_pad // 2), 8)
        m_pad = _round_up(m, bm)
        num_m = m_pad // bm

    # ---- zero-pad operands to tile multiples (padding is sliced off) ----------
    if m_pad != m or k_pad != dim_in:
        x_p = jnp.pad(x2d, ((0, m_pad - m), (0, k_pad - dim_in)))
    else:
        x_p = x2d
    if k_pad != dim_in or n_pad != dim_out:
        w_p = jnp.pad(weight, ((0, k_pad - dim_in), (0, n_pad - dim_out)))
    else:
        w_p = weight
    inv_x_p = inv_x if m_pad == m else jnp.pad(inv_x, ((0, m_pad - m), (0, 0)),
                                               constant_values=1.0)
    inv_w_p = inv_w if n_pad == dim_out else jnp.pad(inv_w, ((0, 0), (0, n_pad - dim_out)),
                                                     constant_values=1.0)

    # ---- grid order: keep the LARGER operand resident / read once -------------
    x_bytes = m_pad * k_pad * x_itemsize
    w_bytes = k_pad * n_pad * w_itemsize
    x_resident = x_bytes >= w_bytes

    if x_resident:   # M outer, N inner: x tile (and inv_x) resident across the N sweep
        grid = (num_m, num_n, num_k)
        xmap  = lambda i, j, k: (i, k)
        ixmap = lambda i, j, k: (i, 0)
        iwmap = lambda i, j, k: (0, j)
        wmap  = lambda i, j, k: (k, j)
        omap  = lambda i, j, k: (i, j)
    else:            # N outer, M inner: weight tile (and inv_w) resident across the M sweep
        grid = (num_n, num_m, num_k)
        xmap  = lambda j, i, k: (i, k)
        ixmap = lambda j, i, k: (i, 0)
        iwmap = lambda j, i, k: (0, j)
        wmap  = lambda j, i, k: (k, j)
        omap  = lambda j, i, k: (i, j)

    if num_k == 1:
        kernel = functools.partial(_csl_kernel, matmul_dtype=matmul_dtype)
        scratch = []
    else:
        kernel = functools.partial(_csl_kernel_ktiled, matmul_dtype=matmul_dtype)
        scratch = [pltpu.VMEM((bm, bn), jnp.float32)]

    ws = _working_set(bm, bn, bk)
    vmem_limit = int(min(vmem_cap - (8 << 20), max(2 * ws, 32 << 20)))

    # Truthful HBM traffic for the chosen streaming pattern.
    x_reads = 1 if (num_k == 1 and x_resident) else num_n
    w_reads = 1 if (num_k == 1 and not x_resident) else num_m
    cost = pl.CostEstimate(
        flops=2 * m_pad * k_pad * n_pad,
        transcendentals=0,
        bytes_accessed=int(x_reads * x_p.size * x_itemsize
                           + w_reads * w_p.size * w_itemsize
                           + inv_x_p.size * 4 + inv_w_p.size * 4
                           + m_pad * n_pad * out_itemsize),
    )

    out2d = pl.pallas_call(
        kernel,
        out_shape=jax.ShapeDtypeStruct((m_pad, n_pad), out_dtype),
        grid_spec=pltpu.PrefetchScalarGridSpec(
            num_scalar_prefetch=0,
            grid=grid,
            in_specs=[
                pl.BlockSpec((bm, bk), xmap),     # x rows
                pl.BlockSpec((bm, 1), ixmap),     # 1/||x_row||           (f32)
                pl.BlockSpec((1, bn), iwmap),     # scale/||w_col||       (f32)
                pl.BlockSpec((bk, bn), wmap),     # weight columns
            ],
            out_specs=pl.BlockSpec((bm, bn), omap),
            scratch_shapes=scratch,
        ),
        compiler_params=pltpu.CompilerParams(
            dimension_semantics=("parallel", "parallel", "arbitrary"),
            vmem_limit_bytes=vmem_limit,
        ),
        cost_estimate=cost,
    )(x_p, inv_x_p, inv_w_p, w_p)

    out2d = out2d[:m, :dim_out]
    return out2d.reshape(*orig_shape[:-1], dim_out)


# ----------------------------------------------------------------------------- reference
def cosine_sim_linear_ref(x, weight, scale=1.0, eps=1e-12):
    xn = x / jnp.maximum(jnp.linalg.norm(x, axis=-1, keepdims=True), eps)
    wn = weight / jnp.maximum(jnp.linalg.norm(weight, axis=0, keepdims=True), eps)
    return xn @ wn * scale


if __name__ == "__main__":
    key = jax.random.PRNGKey(0)
    kx, kw, kx2, kw2 = jax.random.split(key, 4)

    # --- test 1: small shapes matching the module (f32 path, ragged N, split-M grid)
    batch, seq, dim_in, dim_out = 2, 8, 32, 64
    scale = 1.0
    x = jax.random.normal(kx, (batch, seq, dim_in), dtype=jnp.float32)
    weight = jax.random.normal(kw, (dim_in, dim_out), dtype=jnp.float32)  # randn(dim_in, dim_out)

    out = jax.block_until_ready(cosine_sim_linear(x, weight, scale=scale))
    ref = cosine_sim_linear_ref(x, weight, scale=scale)
    assert out.shape == (batch, seq, dim_out)
    assert jnp.allclose(out, ref, atol=1e-4, rtol=1e-4), "mismatch vs reference (f32)"

    # --- test 2: same shapes, bf16 MXU path (f32 accumulation kept)
    out_bf16 = jax.block_until_ready(
        cosine_sim_linear(x, weight, scale=scale, matmul_dtype=jnp.bfloat16))
    assert jnp.allclose(out_bf16, ref, atol=5e-2, rtol=5e-2), "mismatch vs reference (bf16)"

    # --- test 3: K-tiled accumulator path (forced with block_k)
    m2, k2, n2 = 32, 256, 200
    x2 = jax.random.normal(kx2, (2, m2 // 2, k2), dtype=jnp.float32)
    w2 = jax.random.normal(kw2, (k2, n2), dtype=jnp.float32)
    out2 = jax.block_until_ready(cosine_sim_linear(x2, w2, scale=0.5, block_k=128))
    ref2 = cosine_sim_linear_ref(x2, w2, scale=0.5)
    assert out2.shape == (2, m2 // 2, n2)
    assert jnp.allclose(out2, ref2, atol=1e-4, rtol=1e-4), "mismatch vs reference (K-tiled)"

    print("KERNEL_OK")
</pallas_src>

<mosaic_0001>
module attributes {stable_mosaic.version = 11 : i64} {
  func.func @_csl_kernel(%arg0: i32, %arg1: i32, %arg2: i32, %arg3: memref<8x32xf32, #tpu.memory_space<vmem>>, %arg4: memref<8x1xf32, #tpu.memory_space<vmem>>, %arg5: memref<1x128xf32, #tpu.memory_space<vmem>>, %arg6: memref<32x128xf32, #tpu.memory_space<vmem>>, %arg7: memref<8x128xf32, #tpu.memory_space<vmem>>) attributes {dimension_semantics = [#tpu.dimension_semantics<parallel>, #tpu.dimension_semantics<parallel>, #tpu.dimension_semantics<arbitrary>], iteration_bounds = array<i64: 1, 2, 1>, scalar_prefetch = 0 : i64, scratch_operands = 0 : i64, tpu.core_type = #tpu.core_type<tc>, window_params = [{transform_indices = @transform_0, window_bounds = array<i64: 8, 32>}, {transform_indices = @transform_1, window_bounds = array<i64: 8, 1>}, {transform_indices = @transform_2, window_bounds = array<i64: 1, 128>}, {transform_indices = @transform_3, window_bounds = array<i64: 32, 128>}, {transform_indices = @transform_4, window_bounds = array<i64: 8, 128>}]} {
    %c0 = arith.constant 0 : index
    %c0_0 = arith.constant 0 : index
    %0 = vector.load %arg3[%c0, %c0_0] : memref<8x32xf32, #tpu.memory_space<vmem>>, vector<8x32xf32>
    %c0_1 = arith.constant 0 : index
    %c0_2 = arith.constant 0 : index
    %1 = vector.load %arg6[%c0_1, %c0_2] : memref<32x128xf32, #tpu.memory_space<vmem>>, vector<32x128xf32>
    %cst = arith.constant dense<0.000000e+00> : vector<8x128xf32>
    %2 = tpu.matmul %0, %1, %cst {dimension_numbers = #tpu.dot_dimension_numbers<[1], [0], [0], [1], [0, 0, 1, 1], [], []>} : vector<8x32xf32>, vector<32x128xf32>, vector<8x128xf32> -> vector<8x128xf32>
    %c0_3 = arith.constant 0 : index
    %c0_4 = arith.constant 0 : index
    %3 = vector.load %arg4[%c0_3, %c0_4] : memref<8x1xf32, #tpu.memory_space<vmem>>, vector<8x1xf32>
    %4 = vector.broadcast %3 : vector<8x1xf32> to vector<8x128xf32>
    %5 = arith.mulf %2, %4 : vector<8x128xf32>
    %c0_5 = arith.constant 0 : index
    %c0_6 = arith.constant 0 : index
    %6 = vector.load %arg5[%c0_5, %c0_6] : memref<1x128xf32, #tpu.memory_space<vmem>>, vector<1x128xf32>
    %7 = vector.broadcast %6 : vector<1x128xf32> to vector<8x128xf32>
    %8 = arith.mulf %5, %7 : vector<8x128xf32>
    %c0_7 = arith.constant 0 : index
    %c0_8 = arith.constant 0 : index
    %9 = vector.load %arg7[%c0_7, %c0_8] : memref<8x128xf32, #tpu.memory_space<vmem>>, vector<8x128xf32>
    tpu.vector_store %arg7[%c0_7, %c0_8], %8 {strides = array<i32>} : memref<8x128xf32, #tpu.memory_space<vmem>>, vector<8x128xf32>,
    return
  }
  func.func @transform_0(%arg0: i32, %arg1: i32, %arg2: i32) -> (i32, i32) {
    %c0_i32 = arith.constant 0 : i32
    return %arg1, %arg2 : i32, i32
  }
  func.func @transform_1(%arg0: i32, %arg1: i32, %arg2: i32) -> (i32, i32) {
    %c0_i32 = arith.constant 0 : i32
    %c0_i32_0 = arith.constant 0 : i32
    return %arg1, %c0_i32 : i32, i32
  }
  func.func @transform_2(%arg0: i32, %arg1: i32, %arg2: i32) -> (i32, i32) {
    %c0_i32 = arith.constant 0 : i32
    %c0_i32_0 = arith.constant 0 : i32
    return %c0_i32, %arg0 : i32, i32
  }
  func.func @transform_3(%arg0: i32, %arg1: i32, %arg2: i32) -> (i32, i32) {
    %c0_i32 = arith.constant 0 : i32
    return %arg2, %arg0 : i32, i32
  }
  func.func @transform_4(%arg0: i32, %arg1: i32, %arg2: i32) -> (i32, i32) {
    %c0_i32 = arith.constant 0 : i32
    return %arg1, %arg0 : i32, i32
  }
}

</mosaic_0001>

<llo_original>
// kernel: tpu_custom_call.1
$region0: #{tpu_custom_call.1}
  #allocation0 [shape = 'u32[]', space=smem, size = 0x4, offset = 0x4, fixed_abs, tag = 'smem constant byte address 0x4 - core index']
  #allocation1 [shape = 'u32[144,128]{1,0:T(1,128)}', space=vmem, size = 0x12000, scoped, tag = 'internal scratch']
  %s0 = inlined_call_operand.vmem [shape: f32[16,32], index: 0, kind: input, shape index: {}]
  %s1 = inlined_call_operand.vmem [shape: f32[16,1], index: 1, kind: input, shape index: {}]
  %s2 = inlined_call_operand.vmem [shape: f32[1,128], index: 2, kind: input, shape index: {}]
  %s3 = inlined_call_operand.hbm [shape: f32[32,128], index: 3, kind: input, shape index: {}]
  %s4 = inlined_call_operand.hbm [shape: f32[16,128], index: 4, kind: output, shape index: {}]
  %s5 = sld [smem:[#allocation0]]
  $region53: #{tpu_custom_call.1} parent=0
    _
  %s7 = ssub.s32 1, %s5
  %s8 = scalar_select 0, %s7, %s5
  $region1: #{tpu_custom_call.1} parent=0
    #allocation2 [shape = 'u8[16384]{0}', space=vmem, size = 0x4000, scoped, tag = 'input window, operand 3, single buffered']
    #allocation3 [shape = 's32[2]{0}', space=sflag, size = 0x8, scoped, tag = 'scoped memory for tpu_custom_call.1']
    #allocation4 [shape = 's32[2]{0}', space=sflag, size = 0x8, scoped, tag = 'scoped memory for tpu_custom_call.1']
    #allocation5 [shape = 'u8[8192]{0}', space=vmem, size = 0x2000, scoped, tag = 'output window, operand 0']
    %9 = vsyncpa [#allocation3], 0
    %10 = vsyncpa [#allocation4], 0
    %s11 = scalar_lea.sflag [#allocation4], 1
    %12 = vsyncpa %s11, 0
    loop: start=0, step=1, limit=4
    $region2: #{tpu_custom_call.1} parent=1 // loop_pre_header
      _
    $region3: #{tpu_custom_call.1} parent=1 // loop_header
      %s14 = sphi 0, %s18
      %p15 = scmp.ge.s32.totalorder %s14, 4
      %s21 = sphi 0, %s40
      %s22 = sphi 0, %s36
      %s23 = sphi 0, %s32
      %s24 = sphi 0, %s21
      %s25 = sphi 0, %s22
      %s26 = sphi 0, %s23
      %s27 = sphi 0, %s24
      %s28 = sphi 0, %s25
      %s29 = sphi 0, %s26
      %s45 = sphi 0, %s47
      %s48 = sphi 0, %s45
      %s49 = sphi 0, %s48
      %s65 = sphi 0, %s49
      %s71 = sphi 0, %s73
      %s74 = sphi 0, %s71
      %s75 = sphi 0, %s74
      %s91 = sphi 0, %s75
      %s97 = sphi 0, %s99
      %s100 = sphi 0, %s97
      %s101 = sphi 0, %s100
      %s117 = sphi 0, %s101
      %s125 = sphi 0, %s127
      %s128 = sphi 0, %s125
      %s129 = sphi 0, %s128
      %s145 = sphi 0, %s129
      %s153 = sphi 0, %s155
      %s156 = sphi 0, %s153
      %s157 = sphi 0, %s156
      %s173 = sphi 0, %s157
    $region4: #{tpu_custom_call.1} parent=1 // loop_header_branch
      %17 = sbr.rel (%p15) target = $region8
    $region5: #{tpu_custom_call.1} parent=1 // loop_body
      %s19 = ssub.s32 %s14, 1
      %s20 = ssub.s32 %s14, 2
      %s30 = sadd.s32 1, %s23
      %p31 = scmp.ge.s32.totalorder %s30, 1
      %s32 = scalar_select %p31, 0, %s30
      %s33 = sadd.s32 1, %s22
      %s34 = scalar_select %p31, %s33, %s22
      %p35 = scmp.ge.s32.totalorder %s34, 2
      %s36 = scalar_select %p35, 0, %s34
      %s37 = sadd.s32 1, %s21
      %s38 = scalar_select %p35, %s37, %s21
      %p39 = scmp.ge.s32.totalorder %s38, 1
      %s40 = scalar_select %p39, 0, %s38
      %s41 = ssub.s32 %s22, %s36
      %s42 = ssub.s32 %s23, %s32
      %s43 = sor.u32 %s41, %s42
      %p44 = scmp.eq.s32.totalorder %s43, 0
      %s46 = sadd.s32 %s45, 1
      %s47 = scalar_select %p44, %s45, %s46
      %p50 = pneg %p44
      %p51 = scmp.eq.s32.totalorder %s14, 1
      %p52 = por %p50, %p51
      %p53 = scmp.ne.s32.totalorder %s45, %s48
      %p54 = scmp.eq.s32.totalorder %s14, 0
      %p55 = por %p53, %p54
      %p56 = scmp.ne.s32.totalorder %s45, %s48
      %p57 = scmp.eq.s32.totalorder %s19, 1
      %p58 = por %p56, %p57
      %p59 = scmp.ne.s32.totalorder %s48, %s49
      %p60 = scmp.eq.s32.totalorder %s19, 0
      %p61 = por %p59, %p60
      %p62 = scmp.ne.s32.totalorder %s48, %s49
      %p63 = scmp.eq.s32.totalorder %s20, 1
      %p64 = por %p62, %p63
      %p66 = scmp.ne.s32.totalorder %s49, %s65
      %p67 = scmp.eq.s32.totalorder %s20, 0
      %p68 = por %p66, %p67
      %s69 = ssub.s32 %s22, %s36
      %p70 = scmp.eq.s32.totalorder %s69, 0
      %s72 = sadd.s32 %s71, 1
      %s73 = scalar_select %p70, %s71, %s72
      %p76 = pneg %p70
      %p77 = scmp.eq.s32.totalorder %s14, 1
      %p78 = por %p76, %p77
      %p79 = scmp.ne.s32.totalorder %s71, %s74
      %p80 = scmp.eq.s32.totalorder %s14, 0
      %p81 = por %p79, %p80
      %p82 = scmp.ne.s32.totalorder %s71, %s74
      %p83 = scmp.eq.s32.totalorder %s19, 1
      %p84 = por %p82, %p83
      %p85 = scmp.ne.s32.totalorder %s74, %s75
      %p86 = scmp.eq.s32.totalorder %s19, 0
      %p87 = por %p85, %p86
      %p88 = scmp.ne.s32.totalorder %s74, %s75
      %p89 = scmp.eq.s32.totalorder %s20, 1
      %p90 = por %p88, %p89
      %p92 = scmp.ne.s32.totalorder %s75, %s91
      %p93 = scmp.eq.s32.totalorder %s20, 0
      %p94 = por %p92, %p93
      %s95 = ssub.s32 %s21, %s40
      %p96 = scmp.eq.s32.totalorder %s95, 0
      %s98 = sadd.s32 %s97, 1
      %s99 = scalar_select %p96, %s97, %s98
      %p102 = pneg %p96
      %p103 = scmp.eq.s32.totalorder %s14, 1
      %p104 = por %p102, %p103
      %p105 = scmp.ne.s32.totalorder %s97, %s100
      %p106 = scmp.eq.s32.totalorder %s14, 0
      %p107 = por %p105, %p106
      %p108 = scmp.ne.s32.totalorder %s97, %s100
      %p109 = scmp.eq.s32.totalorder %s19, 1
      %p110 = por %p108, %p109
      %p111 = scmp.ne.s32.totalorder %s100, %s101
      %p112 = scmp.eq.s32.totalorder %s19, 0
      %p113 = por %p111, %p112
      %p114 = scmp.ne.s32.totalorder %s100, %s101
      %p115 = scmp.eq.s32.totalorder %s20, 1
      %p116 = por %p114, %p115
      %p118 = scmp.ne.s32.totalorder %s101, %s117
      %p119 = scmp.eq.s32.totalorder %s20, 0
      %p120 = por %p118, %p119
      %s121 = ssub.s32 %s23, %s32
      %s122 = ssub.s32 %s21, %s40
      %s123 = sor.u32 %s121, %s122
      %p124 = scmp.eq.s32.totalorder %s123, 0
      %s126 = sadd.s32 %s125, 1
      %s127 = scalar_select %p124, %s125, %s126
      %p130 = pneg %p124
      %p131 = scmp.eq.s32.totalorder %s14, 1
      %p132 = por %p130, %p131
      %p133 = scmp.ne.s32.totalorder %s125, %s128
      %p134 = scmp.eq.s32.totalorder %s14, 0
      %p135 = por %p133, %p134
      %p136 = scmp.ne.s32.totalorder %s125, %s128
      %p137 = scmp.eq.s32.totalorder %s19, 1
      %p138 = por %p136, %p137
      %p139 = scmp.ne.s32.totalorder %s128, %s129
      %p140 = scmp.eq.s32.totalorder %s19, 0
      %p141 = por %p139, %p140
      %p142 = scmp.ne.s32.totalorder %s128, %s129
      %p143 = scmp.eq.s32.totalorder %s20, 1
      %p144 = por %p142, %p143
      %p146 = scmp.ne.s32.totalorder %s129, %s145
      %p147 = scmp.eq.s32.totalorder %s20, 0
      %p148 = por %p146, %p147
      %s149 = ssub.s32 %s22, %s36
      %s150 = ssub.s32 %s21, %s40
      %s151 = sor.u32 %s149, %s150
      %p152 = scmp.eq.s32.totalorder %s151, 0
      %s154 = sadd.s32 %s153, 1
      %s155 = scalar_select %p152, %s153, %s154
      %p158 = pneg %p152
      %p159 = scmp.eq.s32.totalorder %s14, 1
      %p160 = por %p158, %p159
      %p161 = scmp.ne.s32.totalorder %s153, %s156
      %p162 = scmp.eq.s32.totalorder %s14, 0
      %p163 = por %p161, %p162
      %p164 = scmp.ne.s32.totalorder %s153, %s156
      %p165 = scmp.eq.s32.totalorder %s19, 1
      %p166 = por %p164, %p165
      %p167 = scmp.ne.s32.totalorder %s156, %s157
      %p168 = scmp.eq.s32.totalorder %s19, 0
      %p169 = por %p167, %p168
      %p170 = scmp.ne.s32.totalorder %s156, %s157
      %p171 = scmp.eq.s32.totalorder %s20, 1
      %p172 = por %p170, %p171
      %p174 = scmp.ne.s32.totalorder %s157, %s173
      %p175 = scmp.eq.s32.totalorder %s20, 0
      %p176 = por %p174, %p175
      %p177 = scmp.le.s32.totalorder 1, %s14
      %p178 = scmp.lt.s32.totalorder %s14, 3
      %p179 = pnand %p177, %p178
      %p180 = pneg %p179
      // Predicated region
      $region9: #{tpu_custom_call.1} parent=5 // pred_check
        _
      $region10: #{tpu_custom_call.1} parent=5 // pred_check_branch
        %182 = sbr.rel (%p179) target = $region12
      $region11: #{tpu_custom_call.1} parent=5 // pred_region
        %s183 = ssub.s32 %s14, 1
        // Predicated region
        $region13: #{tpu_custom_call.1} parent=11 // pred_check
          %p184 = pneg %p113
        $region14: #{tpu_custom_call.1} parent=11 // pred_check_branch
          %186 = sbr.rel (%p184) target = $region16
        $region15: #{tpu_custom_call.1} parent=11 // pred_region
          %p187 = scmp.lt.s32.totalorder %s24, 0
          %s188 = scalar_select %p187, %s24, 0
          %s189 = scalar_lea.vmem %s2, %s188
        $region16: #{tpu_custom_call.1} parent=11 // pred_fallthru
          _
        // Predicated region
        $region17: #{tpu_custom_call.1} parent=11 // pred_check
          %p190 = pneg %p141
        $region18: #{tpu_custom_call.1} parent=11 // pred_check_branch
          %192 = sbr.rel (%p190) target = $region20
        $region19: #{tpu_custom_call.1} parent=11 // pred_region
          %s193 = smul.u32 4, %s26
          %s195 = ssub.s32 512, 512
          %196 = vsyncadd [#allocation3], %s195
          %s197 = sadd.s32 %s24, %s193
          %s198 = smul.addr %s197, 128
          %s199 = scalar_lea.hbm %s3, %s198
          %s200 = sshll.u32 [#allocation2], 4
          %s201 = int_to_ptr.vmem [resolvable:$true] %s200
          %206 = dma.hbm_to_vmem [thread:$0]  %s199, 512, %s201, [#allocation3], 128, 128, 8
        $region20: #{tpu_custom_call.1} parent=11 // pred_fallthru
          _
      $region12: #{tpu_custom_call.1} parent=5 // pred_fallthru
        _
      %p207 = scmp.lt.s32.totalorder %s14, 2
      // Predicated region
      $region21: #{tpu_custom_call.1} parent=5 // pred_check
        %p208 = pneg %p207
      $region22: #{tpu_custom_call.1} parent=5 // pred_check_branch
        %210 = sbr.rel (%p208) target = $region24
      $region23: #{tpu_custom_call.1} parent=5 // pred_region
        // Predicated region
        $region25: #{tpu_custom_call.1} parent=23 // pred_check
          %p211 = pneg %p55
        $region26: #{tpu_custom_call.1} parent=23 // pred_check_branch
          %213 = sbr.rel (%p211) target = $region28
        $region27: #{tpu_custom_call.1} parent=23 // pred_region
          %p214 = scmp.lt.s32.totalorder %s22, 1
          %s215 = scalar_select %p214, %s22, 1
          %p216 = scmp.lt.s32.totalorder %s23, 0
          %s217 = scalar_select %p216, %s23, 0
          %s218 = sadd.s32 %s217, %s215
          %s219 = smul.addr %s218, 8
          %s220 = scalar_lea.vmem %s0, %s219
        $region28: #{tpu_custom_call.1} parent=23 // pred_fallthru
          _
        // Predicated region
        $region29: #{tpu_custom_call.1} parent=23 // pred_check
          %p221 = pneg %p81
        $region30: #{tpu_custom_call.1} parent=23 // pred_check_branch
          %223 = sbr.rel (%p221) target = $region32
        $region31: #{tpu_custom_call.1} parent=23 // pred_region
          %p224 = scmp.lt.s32.totalorder %s22, 1
          %s225 = scalar_select %p224, %s22, 1
          %s226 = smul.addr %s225, 8
          %s227 = scalar_lea.vmem %s1, %s226
        $region32: #{tpu_custom_call.1} parent=23 // pred_fallthru
          _
      $region24: #{tpu_custom_call.1} parent=5 // pred_fallthru
        _
      %p228 = scmp.le.s32.totalorder 1, %s14
      %p229 = scmp.lt.s32.totalorder %s14, 3
      %p230 = pnand %p228, %p229
      %p231 = pneg %p230
      // Predicated region
      $region33: #{tpu_custom_call.1} parent=5 // pred_check
        _
      $region34: #{tpu_custom_call.1} parent=5 // pred_check_branch
        %233 = sbr.rel (%p230) target = $region36
      $region35: #{tpu_custom_call.1} parent=5 // pred_region
        %s234 = ssub.s32 %s14, 1
        // Predicated region
        $region37: #{tpu_custom_call.1} parent=35 // pred_check
          %p235 = pneg %p141
        $region38: #{tpu_custom_call.1} parent=35 // pred_check_branch
          %237 = sbr.rel (%p235) target = $region40
        $region39: #{tpu_custom_call.1} parent=35 // pred_region
          %238 = dma.done [#allocation3], 512
        $region40: #{tpu_custom_call.1} parent=35 // pred_fallthru
          _
        %p239 = scmp.lt.s32.totalorder %s25, 1
        %s240 = scalar_select %p239, %s25, 1
        %p241 = scmp.lt.s32.totalorder %s26, 0
        %s242 = scalar_select %p241, %s26, 0
        %s243 = sadd.s32 %s242, %s240
        %s244 = smul.addr %s243, 8
        %s245 = scalar_lea.vmem %s0, %s244
        %p246 = pneg %p61
        %p247 = pneg %p58
        %p248 = scmp.lt.s32.totalorder %s25, 1
        %s249 = scalar_select %p248, %s25, 1
        %s250 = smul.addr %s249, 8
        %s251 = scalar_lea.vmem %s1, %s250
        %p252 = pneg %p87
        %p253 = pneg %p84
        %p254 = scmp.lt.s32.totalorder %s24, 0
        %s255 = scalar_select %p254, %s24, 0
        %s256 = scalar_lea.vmem %s2, %s255
        %p257 = pneg %p113
        %p258 = pneg %p110
        %p259 = pneg %p141
        %p260 = pneg %p138
        %p261 = pneg %p169
        %p262 = pneg %p166
        %s263 = sand.u32 %s156, 1
        %s264 = scalar_lea.sflag [#allocation4], %s263
        %s265 = sand.u32 %s156, 1
        %s266 = smul.addr %s265, 8
        %s267 = scalar_lea.vmem [#allocation5], %s266
        %p268 = scmp.lt.s32.totalorder %s25, 1
        %s269 = scalar_select %p268, %s25, 1
        %p270 = scmp.lt.s32.totalorder %s26, 0
        %s271 = scalar_select %p270, %s26, 0
        %s272 = sadd.s32 %s271, %s269
        %s273 = smul.addr %s272, 8
        %s274 = scalar_lea.vmem %s0, %s273
        %p275 = scmp.lt.s32.totalorder %s25, 1
        %s276 = scalar_select %p275, %s25, 1
        %s277 = smul.addr %s276, 8
        %s278 = scalar_lea.vmem %s1, %s277
        %p279 = scmp.lt.s32.totalorder %s24, 0
        %s280 = scalar_select %p279, %s24, 0
        %s281 = scalar_lea.vmem %s2, %s280
        %s282 = smul.u32 4, %s26
        %v283 = vld [vmem:[%s274] sm:$0xff]
        %v284 = vld [vmem:[#allocation2] sm:$0xff]
        %v285 = vld [vmem:[#allocation2 + $0x8] sm:$0xff]
        %v286 = vld [vmem:[#allocation2 + $0x10] sm:$0xff]
        %v287 = vld [vmem:[#allocation2 + $0x18] sm:$0xff]
        %vm288 = vcmask 261120
        %v290 = vsel %vm288, %v283, 0
        %292 = vmatprep.subr.mxu0 0.0
        %293 = vmatpush1.msra.mxu0 0.0
        %294 = vmatprep.subr.mxu0 0.0
        %295 = vmatpush1.msra.mxu0 0.0
        %296 = vmatprep.subr.mxu0 0.0
        %297 = vmatpush1.msra.mxu0 0.0
        %298 = vmatprep.subr.mxu0 0.0
        %299 = vmatpush1.msra.mxu0 0.0
        %300 = vmatprep.subr.mxu0 0.0
        %301 = vmatpush1.msra.mxu0 0.0
        %302 = vmatprep.subr.mxu0 0.0
        %303 = vmatpush1.msra.mxu0 0.0
        %304 = vmatprep.subr.mxu0 0.0
        %305 = vmatpush1.msra.mxu0 0.0
        %306 = vmatprep.subr.mxu0 0.0
        %307 = vmatpush1.msra.mxu0 0.0
        %308 = vmatprep.subr.mxu0 0.0
        %309 = vmatpush1.msra.mxu0 0.0
        %310 = vmatprep.subr.mxu0 0.0
        %311 = vmatpush1.msra.mxu0 0.0
        %312 = vmatprep.subr.mxu0 0.0
        %313 = vmatpush1.msra.mxu0 0.0
        %314 = vmatprep.subr.mxu0 0.0
        %315 = vmatpush1.msra.mxu0 0.0
        %316 = vmatprep.subr.mxu0 0.0
        %317 = vmatpush1.msra.mxu0 %v287
        %318 = vmatprep.subr.mxu0 0.0
        %319 = vmatpush1.msra.mxu0 %v286
        %320 = vmatprep.subr.mxu0 0.0
        %321 = vmatpush1.msra.mxu0 %v285
        %322 = vmatprep.subr.mxu0 0.0
        %323 = vmatpush1.msra.mxu0 %v284
        %324 = vmatprep.subr.mxu0 0.0
        %325 = vmatpush2.msra.mxu0 0.0
        %326 = vmatprep.subr.mxu0 0.0
        %327 = vmatpush2.msra.mxu0 0.0
        %328 = vmatprep.subr.mxu0 0.0
        %329 = vmatpush2.msra.mxu0 0.0
        %330 = vmatprep.subr.mxu0 0.0
        %331 = vmatpush2.msra.mxu0 0.0
        %332 = vmatprep.subr.mxu0 0.0
        %333 = vmatpush2.msra.mxu0 0.0
        %334 = vmatprep.subr.mxu0 0.0
        %335 = vmatpush2.msra.mxu0 0.0
        %336 = vmatprep.subr.mxu0 0.0
        %337 = vmatpush2.msra.mxu0 0.0
        %338 = vmatprep.subr.mxu0 0.0
        %339 = vmatpush2.msra.mxu0 0.0
        %340 = vmatprep.subr.mxu0 0.0
        %341 = vmatpush2.msra.mxu0 0.0
        %342 = vmatprep.subr.mxu0 0.0
        %343 = vmatpush2.msra.mxu0 0.0
        %344 = vmatprep.subr.mxu0 0.0
        %345 = vmatpush2.msra.mxu0 0.0
        %346 = vmatprep.subr.mxu0 0.0
        %347 = vmatpush2.msra.mxu0 0.0
        %348 = vmatprep.subr.mxu0 0.0
        %349 = vmatpush2.msra.mxu0 0.0
        %350 = vmatprep.subr.mxu0 0.0
        %351 = vmatpush2.msra.mxu0 0.0
        %352 = vmatprep.subr.mxu0 0.0
        %353 = vmatpush2.msra.mxu0 0.0
        %354 = vmatprep.subr.mxu0 0.0
        %355 = vmatpush2.msra.mxu0 0.0
        %356 = vmatprep.mubr.f32.mxu0 0.0
        %357 = vmatmul.mubr.f32.gmra.mxu0 %v290
        %v358 = vpop.f32.mrf.mxu0
        %v359 = vadd.f32 0.0, %v358
        %v360 = vpop.f32.mrf.mxu0
        %361 = vdwg.mxu0
        %v362 = vld [vmem:[%s278] sm:$0xff]
        %364 = vset.pattern.permute.xlu0 0
        %365 = vperm.xlu0 %364, %v362
        %v366 = vpop.permute.xlu0 %365
        %v368 = vmul.f32 %v359, %v366
        %v369 = vld [vmem:[%s281] sm:$0x1]
        %v371 = vlaneseq
        %v372 = vshrl.u32 %v371, 7
        %v373 = vsub.s32 0, %v372
        %v374 = vrot.slane %v369, %v373
        %v376 = vmul.f32 %v368, %v374
        %377 = vst [vmem:[%s267] sm:$0xff] %v376
        %s378 = sand.u32 %s156, 1
        %s379 = scalar_lea.sflag [#allocation4], %s378
        %s380 = sand.u32 %s156, 1
        %s381 = smul.addr %s380, 8
        %s382 = scalar_lea.vmem [#allocation5], %s381
        // Predicated region
        $region41: #{tpu_custom_call.1} parent=35 // pred_check
          %p383 = pneg %p166
        $region42: #{tpu_custom_call.1} parent=35 // pred_check_branch
          %385 = sbr.rel (%p383) target = $region44
        $region43: #{tpu_custom_call.1} parent=35 // pred_region
          %s387 = ssub.s32 128, 128
          %388 = vsyncadd %s379, %s387
          %s389 = sadd.s32 %s24, %s25
          %s390 = smul.addr %s389, 128
          %s391 = scalar_lea.hbm %s4, %s390
          %s393 = sshll.u32 %s382, 4
          %s394 = int_to_ptr.vmem [resolvable:$true] %s393
          %396 = dma.vmem_to_hbm [thread:$0]  %s394, 128, %s391, %s379
        $region44: #{tpu_custom_call.1} parent=35 // pred_fallthru
          _
      $region36: #{tpu_custom_call.1} parent=5 // pred_fallthru
        _
      %p397 = scmp.le.s32.totalorder 2, %s14
      // Predicated region
      $region45: #{tpu_custom_call.1} parent=5 // pred_check
        %p398 = pneg %p397
      $region46: #{tpu_custom_call.1} parent=5 // pred_check_branch
        %400 = sbr.rel (%p398) target = $region48
      $region47: #{tpu_custom_call.1} parent=5 // pred_region
        %s401 = ssub.s32 %s14, 2
        // Predicated region
        $region49: #{tpu_custom_call.1} parent=47 // pred_check
          %p402 = pneg %p172
        $region50: #{tpu_custom_call.1} parent=47 // pred_check_branch
          %404 = sbr.rel (%p402) target = $region52
        $region51: #{tpu_custom_call.1} parent=47 // pred_region
          %s405 = sand.u32 %s157, 1
          %s406 = scalar_lea.sflag [#allocation4], %s405
          %s407 = sand.u32 %s157, 1
          %s408 = smul.addr %s407, 8
          %s409 = scalar_lea.vmem [#allocation5], %s408
          %410 = dma.done %s406, 128
        $region52: #{tpu_custom_call.1} parent=47 // pred_fallthru
          _
      $region48: #{tpu_custom_call.1} parent=5 // pred_fallthru
        _
    $region6: #{tpu_custom_call.1} parent=1 // loop_footer
      %s18 = sadd.s32 1, %s14
    $region7: #{tpu_custom_call.1} parent=1 // loop_footer_branch
      %13 = sbr.rel target = $region3
    $region8: #{tpu_custom_call.1} parent=1 // loop_exit
      _
    %411 = vsyncpa [#allocation3], 1
    %s412 = scalar_lea.sflag [#allocation3], 1
    %413 = vsyncpa %s412, 1
    %414 = vsyncpa [#allocation4], 1
    %s415 = scalar_lea.sflag [#allocation4], 1
    %416 = vsyncpa %s415, 1

</llo_original>
